<compile_context>
chip_gen: v7x
topology: tpu7x:2x2x1
jax: 0.10.0
libtpu: 0.0.40
codegen_flags: <defaults>
</compile_context>

<pallas_src>
import functools

import jax
import jax.numpy as jnp
from jax.experimental import pallas as pl
from jax.experimental.pallas import tpu as pltpu

# ---------------- model hyper-parameters (small, synthetic) ----------------
EMB_DIM = 128                 # cfg['emb_dim']; keeps every last dim lane-dense
HIDDEN_DIM = 4 * EMB_DIM      # 512
BATCH = 2
SEQ_LEN = 8

_GELU_C = 0.7978845608028654  # sqrt(2 / pi), same constant in kernel & refs
_GELU_A = 0.044715


def _default_gelu_dtype():
    """bf16 elementwise GELU only where the VPU/EUP have a bf16 path."""
    try:
        kind = jax.devices()[0].device_kind.lower()
    except Exception:
        return jnp.float32
    if ("v6" in kind) or ("v7" in kind):
        return jnp.bfloat16
    return jnp.float32          # v5e/v5p/v4/...: f32 VPU/EUP only


def _ffn_kernel(x_ref, w1_ref, b1_ref, w2_ref, b2_ref, o_ref, *,
                gelu_dtype, h_chunk):
    """One row-tile: y = GELU(x @ W1 + b1) @ W2 + b2, hidden dim chunked.

    x_ref:  (tile_n, E)  f32   (cast to bf16 once, in VMEM)
    w1_ref: (E, H)       bf16  (resident)
    b1_ref: (1, H)       f32
    w2_ref: (H, E)       bf16  (resident)
    b2_ref: (1, E)       f32
    o_ref:  (tile_n, E)  f32
    """
    x = x_ref[...].astype(w1_ref.dtype)           # single in-kernel cast
    H = w1_ref.shape[1]

    c0 = jnp.asarray(_GELU_C, dtype=gelu_dtype)
    c1 = jnp.asarray(_GELU_A, dtype=gelu_dtype)

    acc = jnp.zeros(o_ref.shape, jnp.float32)     # (tile_n, E) f32 accumulator

    # Static unrolled chunking of the hidden dim: keeps the (tile_n, h_chunk)
    # intermediate in-register instead of spilling a (tile_n, H) tensor.
    for hk in range(0, H, h_chunk):
        sl = slice(hk, hk + h_chunk)
        # First projection chunk: bf16 operands on the MXU, f32 accumulate.
        h = jnp.dot(x, w1_ref[:, sl], preferred_element_type=jnp.float32)
        h = (h + b1_ref[:, sl]).astype(gelu_dtype)
        # tanh-approximation GELU (exactly the PyTorch formula).
        # VPU polynomial + EUP tanh; bf16 on v6e/v7x, f32 on v5e.
        h = 0.5 * h * (1.0 + jnp.tanh(c0 * (h + c1 * (h * h * h))))
        # Second projection chunk, reduced straight into the f32 accumulator.
        acc = acc + jnp.dot(h.astype(w2_ref.dtype), w2_ref[sl, :],
                            preferred_element_type=jnp.float32)

    o_ref[...] = (acc + b2_ref[...]).astype(o_ref.dtype)


def feed_forward(x, w1, b1, w2, b2, *, row_tile=None, gelu_dtype=None,
                 h_chunk=None, out_dtype=None):
    """x: (B, T, E) -> (B, T, E).

    Weights are [in_features, out_features] (y = x @ W + b), matching
    PyTorch's x @ W.T + b with W of shape [out, in]. Pass W1/W2 already in
    bf16 (stored at rest); biases in f32.
    """
    B, T, E = x.shape
    H = w1.shape[1]
    N = B * T

    out_dtype = x.dtype if out_dtype is None else out_dtype
    gelu_dtype = _default_gelu_dtype() if gelu_dtype is None else gelu_dtype

    if h_chunk is None:
        h_chunk = min(H, 256)
    if H % h_chunk != 0:
        h_chunk = H

    if row_tile is None:
        # MXU-aligned cap; bigger cap when the GELU intermediate is bf16.
        cap = 256 if jnp.dtype(gelu_dtype) == jnp.dtype(jnp.bfloat16) else 128
        row_tile = N if N <= cap else cap
    num_tiles = pl.cdiv(N, row_tile)

    x2 = x.reshape(N, E)                      # metadata-only reshape, no cast

    def _isz(dt):
        return jnp.dtype(dt).itemsize

    # Advisory cost estimate for XLA's scheduler around the custom call.
    cost = pl.CostEstimate(
        flops=4 * N * E * H,                  # two matmuls
        transcendentals=N * H,                # one tanh per hidden element
        bytes_accessed=(N * E * _isz(x.dtype) + E * H * _isz(w1.dtype)
                        + H * _isz(b1.dtype) + H * E * _isz(w2.dtype)
                        + E * _isz(b2.dtype) + N * E * _isz(out_dtype)))

    # VMEM budget: resident weights + double-buffered row tiles + headroom.
    weight_bytes = (E * H * _isz(w1.dtype) + H * _isz(b1.dtype)
                    + H * E * _isz(w2.dtype) + E * _isz(b2.dtype))
    tile_bytes = row_tile * E * (_isz(x.dtype) + _isz(out_dtype))
    est_vmem = 2 * (weight_bytes + tile_bytes) + (4 << 20)
    cp_kwargs = dict(dimension_semantics=("parallel",))
    if est_vmem > (32 << 20):
        cp_kwargs["vmem_limit_bytes"] = int(min(est_vmem, 100 << 20))

    kernel = functools.partial(_ffn_kernel, gelu_dtype=gelu_dtype,
                               h_chunk=h_chunk)

    y2 = pl.pallas_call(
        kernel,
        out_shape=jax.ShapeDtypeStruct((N, E), out_dtype),
        grid=(num_tiles,),
        in_specs=[
            pl.BlockSpec((row_tile, E), lambda i: (i, 0)),   # x row tile
            pl.BlockSpec((E, H), lambda i: (0, 0)),          # W1 (resident)
            pl.BlockSpec((1, H), lambda i: (0, 0)),          # b1
            pl.BlockSpec((H, E), lambda i: (0, 0)),          # W2 (resident)
            pl.BlockSpec((1, E), lambda i: (0, 0)),          # b2
        ],
        out_specs=pl.BlockSpec((row_tile, E), lambda i: (i, 0)),
        compiler_params=pltpu.CompilerParams(**cp_kwargs),
        cost_estimate=cost,
    )(x2, w1, b1, w2, b2)

    return y2.reshape(B, T, E)


def _reference_matched(x, w1, b1, w2, b2, gelu_dtype):
    """Pure-JAX reference mirroring the kernel's precision choices."""
    B, T, E = x.shape
    xb = x.reshape(-1, E).astype(w1.dtype)
    h = jnp.dot(xb, w1, preferred_element_type=jnp.float32) + b1
    h = h.astype(gelu_dtype)
    c0 = jnp.asarray(_GELU_C, gelu_dtype)
    c1 = jnp.asarray(_GELU_A, gelu_dtype)
    h = 0.5 * h * (1.0 + jnp.tanh(c0 * (h + c1 * (h * h * h))))
    y = jnp.dot(h.astype(w2.dtype), w2, preferred_element_type=jnp.float32) + b2
    return y.reshape(B, T, E).astype(x.dtype)


def _reference_f32(x, w1, b1, w2, b2):
    """Pure-f32 PyTorch-equivalent reference (non-circular precision check)."""
    B, T, E = x.shape
    xf = x.reshape(-1, E).astype(jnp.float32)
    h = xf @ w1.astype(jnp.float32) + b1.astype(jnp.float32)
    h = 0.5 * h * (1.0 + jnp.tanh(_GELU_C * (h + _GELU_A * h * h * h)))
    y = h @ w2.astype(jnp.float32) + b2.astype(jnp.float32)
    return y.reshape(B, T, E)


if __name__ == "__main__":
    key = jax.random.PRNGKey(0)
    kx, k1, kb1, k2, kb2 = jax.random.split(key, 5)

    B, T, E, H = BATCH, SEQ_LEN, EMB_DIM, HIDDEN_DIM
    x = jax.random.normal(kx, (B, T, E), dtype=jnp.float32)

    # Deterministic synthetic parameters. Weights are cast to bf16 ONCE here
    # ("stored at rest"), not per forward call; biases stay f32.
    w1_f32 = jax.random.normal(k1, (E, H), dtype=jnp.float32) / jnp.sqrt(jnp.float32(E))
    b1 = jax.random.normal(kb1, (1, H), dtype=jnp.float32) * 0.01
    w2_f32 = jax.random.normal(k2, (H, E), dtype=jnp.float32) / jnp.sqrt(jnp.float32(H))
    b2 = jax.random.normal(kb2, (1, E), dtype=jnp.float32) * 0.01
    w1 = w1_f32.astype(jnp.bfloat16)
    w2 = w2_f32.astype(jnp.bfloat16)

    gelu_dtype = _default_gelu_dtype()

    out = feed_forward(x, w1, b1, w2, b2, gelu_dtype=gelu_dtype)
    out = jax.block_until_ready(out)
    assert out.shape == (B, T, E)
    assert jnp.isfinite(out).all(), "non-finite values in kernel output"

    # 1) Precision-matched reference (tight-ish tolerance).
    ref_m = _reference_matched(x, w1, b1, w2, b2, gelu_dtype)
    assert jnp.allclose(out, ref_m, atol=5e-2, rtol=5e-2), \
        "mismatch vs precision-matched reference"

    # 2) Pure-f32 PyTorch-equivalent reference (looser tolerance; catches
    #    real math/precision regressions rather than being circular).
    ref_f = _reference_f32(x, w1_f32, b1, w2_f32, b2)
    assert jnp.allclose(out, ref_f, atol=1e-1, rtol=1e-1), \
        "mismatch vs pure-f32 reference"

    print("KERNEL_OK")
</pallas_src>

<mosaic_0001>
module attributes {stable_mosaic.version = 11 : i64} {
  func.func @_ffn_kernel(%arg0: i32, %arg1: memref<16x128xf32, #tpu.memory_space<vmem>>, %arg2: memref<128x512xbf16, #tpu.memory_space<vmem>>, %arg3: memref<1x512xf32, #tpu.memory_space<vmem>>, %arg4: memref<512x128xbf16, #tpu.memory_space<vmem>>, %arg5: memref<1x128xf32, #tpu.memory_space<vmem>>, %arg6: memref<16x128xf32, #tpu.memory_space<vmem>>) attributes {dimension_semantics = [#tpu.dimension_semantics<parallel>], iteration_bounds = array<i64: 1>, scalar_prefetch = 0 : i64, scratch_operands = 0 : i64, tpu.core_type = #tpu.core_type<tc>, window_params = [{transform_indices = @transform_0, window_bounds = array<i64: 16, 128>}, {pipeline_mode = #tpu.pipeline_mode<synchronous>, transform_indices = @transform_1, window_bounds = array<i64: 128, 512>}, {pipeline_mode = #tpu.pipeline_mode<synchronous>, transform_indices = @transform_2, window_bounds = array<i64: 1, 512>}, {pipeline_mode = #tpu.pipeline_mode<synchronous>, transform_indices = @transform_3, window_bounds = array<i64: 512, 128>}, {pipeline_mode = #tpu.pipeline_mode<synchronous>, transform_indices = @transform_4, window_bounds = array<i64: 1, 128>}, {transform_indices = @transform_5, window_bounds = array<i64: 16, 128>}]} {
    %c0 = arith.constant 0 : index
    %c0_0 = arith.constant 0 : index
    %0 = vector.load %arg1[%c0, %c0_0] : memref<16x128xf32, #tpu.memory_space<vmem>>, vector<16x128xf32>
    %1 = arith.truncf %0 : vector<16x128xf32> to vector<16x128xbf16>
    %cst = arith.constant 0.000000e+00 : f32
    %2 = vector.broadcast %cst : f32 to vector<16x128xf32>
    %c0_1 = arith.constant 0 : index
    %c0_2 = arith.constant 0 : index
    %3 = vector.load %arg2[%c0_1, %c0_2] : memref<128x512xbf16, #tpu.memory_space<vmem>>, vector<128x256xbf16>
    %cst_3 = arith.constant dense<0.000000e+00> : vector<16x256xf32>
    %4 = tpu.matmul %1, %3, %cst_3 {dimension_numbers = #tpu.dot_dimension_numbers<[1], [0], [0], [1], [0, 0, 1, 1], [], []>} : vector<16x128xbf16>, vector<128x256xbf16>, vector<16x256xf32> -> vector<16x256xf32>
    %c0_4 = arith.constant 0 : index
    %c0_5 = arith.constant 0 : index
    %5 = vector.load %arg3[%c0_4, %c0_5] : memref<1x512xf32, #tpu.memory_space<vmem>>, vector<1x256xf32>
    %6 = vector.broadcast %5 : vector<1x256xf32> to vector<16x256xf32>
    %7 = arith.addf %4, %6 : vector<16x256xf32>
    %cst_6 = arith.constant 5.000000e-01 : f32
    %8 = vector.broadcast %cst_6 : f32 to vector<16x256xf32>
    %9 = arith.mulf %8, %7 : vector<16x256xf32>
    %10 = arith.mulf %7, %7 : vector<16x256xf32>
    %11 = arith.mulf %10, %7 : vector<16x256xf32>
    %cst_7 = arith.constant 4.471500e-02 : f32
    %12 = vector.broadcast %cst_7 : f32 to vector<16x256xf32>
    %13 = arith.mulf %12, %11 : vector<16x256xf32>
    %14 = arith.addf %7, %13 : vector<16x256xf32>
    %cst_8 = arith.constant 0.797884583 : f32
    %15 = vector.broadcast %cst_8 : f32 to vector<16x256xf32>
    %16 = arith.mulf %15, %14 : vector<16x256xf32>
    %17 = math.tanh %16 : vector<16x256xf32>
    %cst_9 = arith.constant 1.000000e+00 : f32
    %18 = vector.broadcast %cst_9 : f32 to vector<16x256xf32>
    %19 = arith.addf %18, %17 : vector<16x256xf32>
    %20 = arith.mulf %9, %19 : vector<16x256xf32>
    %21 = arith.truncf %20 : vector<16x256xf32> to vector<16x256xbf16>
    %c0_10 = arith.constant 0 : index
    %c0_11 = arith.constant 0 : index
    %22 = vector.load %arg4[%c0_10, %c0_11] : memref<512x128xbf16, #tpu.memory_space<vmem>>, vector<256x128xbf16>
    %cst_12 = arith.constant dense<0.000000e+00> : vector<16x128xf32>
    %23 = tpu.matmul %21, %22, %cst_12 {dimension_numbers = #tpu.dot_dimension_numbers<[1], [0], [0], [1], [0, 0, 1, 1], [], []>} : vector<16x256xbf16>, vector<256x128xbf16>, vector<16x128xf32> -> vector<16x128xf32>
    %24 = arith.addf %2, %23 : vector<16x128xf32>
    %c0_13 = arith.constant 0 : index
    %c256 = arith.constant 256 : index
    %25 = vector.load %arg2[%c0_13, %c256] : memref<128x512xbf16, #tpu.memory_space<vmem>>, vector<128x256xbf16>
    %cst_14 = arith.constant dense<0.000000e+00> : vector<16x256xf32>
    %26 = tpu.matmul %1, %25, %cst_14 {dimension_numbers = #tpu.dot_dimension_numbers<[1], [0], [0], [1], [0, 0, 1, 1], [], []>} : vector<16x128xbf16>, vector<128x256xbf16>, vector<16x256xf32> -> vector<16x256xf32>
    %c0_15 = arith.constant 0 : index
    %c256_16 = arith.constant 256 : index
    %27 = vector.load %arg3[%c0_15, %c256_16] : memref<1x512xf32, #tpu.memory_space<vmem>>, vector<1x256xf32>
    %28 = vector.broadcast %27 : vector<1x256xf32> to vector<16x256xf32>
    %29 = arith.addf %26, %28 : vector<16x256xf32>
    %cst_17 = arith.constant 5.000000e-01 : f32
    %30 = vector.broadcast %cst_17 : f32 to vector<16x256xf32>
    %31 = arith.mulf %30, %29 : vector<16x256xf32>
    %32 = arith.mulf %29, %29 : vector<16x256xf32>
    %33 = arith.mulf %32, %29 : vector<16x256xf32>
    %cst_18 = arith.constant 4.471500e-02 : f32
    %34 = vector.broadcast %cst_18 : f32 to vector<16x256xf32>
    %35 = arith.mulf %34, %33 : vector<16x256xf32>
    %36 = arith.addf %29, %35 : vector<16x256xf32>
    %cst_19 = arith.constant 0.797884583 : f32
    %37 = vector.broadcast %cst_19 : f32 to vector<16x256xf32>
    %38 = arith.mulf %37, %36 : vector<16x256xf32>
    %39 = math.tanh %38 : vector<16x256xf32>
    %cst_20 = arith.constant 1.000000e+00 : f32
    %40 = vector.broadcast %cst_20 : f32 to vector<16x256xf32>
    %41 = arith.addf %40, %39 : vector<16x256xf32>
    %42 = arith.mulf %31, %41 : vector<16x256xf32>
    %43 = arith.truncf %42 : vector<16x256xf32> to vector<16x256xbf16>
    %c256_21 = arith.constant 256 : index
    %c0_22 = arith.constant 0 : index
    %44 = vector.load %arg4[%c256_21, %c0_22] : memref<512x128xbf16, #tpu.memory_space<vmem>>, vector<256x128xbf16>
    %cst_23 = arith.constant dense<0.000000e+00> : vector<16x128xf32>
    %45 = tpu.matmul %43, %44, %cst_23 {dimension_numbers = #tpu.dot_dimension_numbers<[1], [0], [0], [1], [0, 0, 1, 1], [], []>} : vector<16x256xbf16>, vector<256x128xbf16>, vector<16x128xf32> -> vector<16x128xf32>
    %46 = arith.addf %24, %45 : vector<16x128xf32>
    %c0_24 = arith.constant 0 : index
    %c0_25 = arith.constant 0 : index
    %47 = vector.load %arg5[%c0_24, %c0_25] : memref<1x128xf32, #tpu.memory_space<vmem>>, vector<1x128xf32>
    %48 = vector.broadcast %47 : vector<1x128xf32> to vector<16x128xf32>
    %49 = arith.addf %46, %48 : vector<16x128xf32>
    %c0_26 = arith.constant 0 : index
    %c0_27 = arith.constant 0 : index
    %50 = vector.load %arg6[%c0_26, %c0_27] : memref<16x128xf32, #tpu.memory_space<vmem>>, vector<16x128xf32>
    tpu.vector_store %arg6[%c0_26, %c0_27], %49 {strides = array<i32>} : memref<16x128xf32, #tpu.memory_space<vmem>>, vector<16x128xf32>,
    return
  }
  func.func @transform_0(%arg0: i32) -> (i32, i32) {
    %c0_i32 = arith.constant 0 : i32
    %c0_i32_0 = arith.constant 0 : i32
    return %arg0, %c0_i32 : i32, i32
  }
  func.func @transform_1(%arg0: i32) -> (i32, i32) {
    %c0_i32 = arith.constant 0 : i32
    %c0_i32_0 = arith.constant 0 : i32
    %c0_i32_1 = arith.constant 0 : i32
    return %c0_i32, %c0_i32_0 : i32, i32
  }
  func.func @transform_2(%arg0: i32) -> (i32, i32) {
    %c0_i32 = arith.constant 0 : i32
    %c0_i32_0 = arith.constant 0 : i32
    %c0_i32_1 = arith.constant 0 : i32
    return %c0_i32, %c0_i32_0 : i32, i32
  }
  func.func @transform_3(%arg0: i32) -> (i32, i32) {
    %c0_i32 = arith.constant 0 : i32
    %c0_i32_0 = arith.constant 0 : i32
    %c0_i32_1 = arith.constant 0 : i32
    return %c0_i32, %c0_i32_0 : i32, i32
  }
  func.func @transform_4(%arg0: i32) -> (i32, i32) {
    %c0_i32 = arith.constant 0 : i32
    %c0_i32_0 = arith.constant 0 : i32
    %c0_i32_1 = arith.constant 0 : i32
    return %c0_i32, %c0_i32_0 : i32, i32
  }
  func.func @transform_5(%arg0: i32) -> (i32, i32) {
    %c0_i32 = arith.constant 0 : i32
    %c0_i32_0 = arith.constant 0 : i32
    return %arg0, %c0_i32 : i32, i32
  }
}

</mosaic_0001>

<llo_original>
// kernel: tpu_custom_call.1
$region0: #{tpu_custom_call.1}
  #allocation0 [shape = 'u32[]', space=smem, size = 0x4, offset = 0x4, fixed_abs, tag = 'smem constant byte address 0x4 - core index']
  #allocation1 [shape = 'u32[144,128]{1,0:T(1,128)}', space=vmem, size = 0x12000, scoped, tag = 'internal scratch']
  %s0 = inlined_call_operand.hbm [shape: f32[16,128], index: 0, kind: input, shape index: {}]
  %s1 = inlined_call_operand.hbm [shape: bf16[128,512], index: 1, kind: input, shape index: {}]
  %s2 = inlined_call_operand.vmem [shape: f32[1,512], index: 2, kind: input, shape index: {}]
  %s3 = inlined_call_operand.hbm [shape: bf16[512,128], index: 3, kind: input, shape index: {}]
  %s4 = inlined_call_operand.vmem [shape: f32[1,128], index: 4, kind: input, shape index: {}]
  %s5 = inlined_call_operand.hbm [shape: f32[16,128], index: 5, kind: output, shape index: {}]
  %s6 = sld [smem:[#allocation0]]
  $region42: #{tpu_custom_call.1} parent=0
    _
  %s8 = ssub.s32 1, %s6
  %s9 = scalar_select 0, %s8, %s6
  $region1: #{tpu_custom_call.1} parent=0
    #allocation2 [shape = 'u8[8192]{0}', space=vmem, size = 0x2000, scoped, tag = 'input window, operand 0, single buffered']
    #allocation3 [shape = 's32[1]{0}', space=sflag, size = 0x4, scoped, tag = 'scoped memory for tpu_custom_call.1']
    #allocation4 [shape = 's32[1]{0}', space=sflag, size = 0x4, scoped, tag = 'scoped memory for tpu_custom_call.1']
    #allocation5 [shape = 'u8[131072]{0}', space=vmem, size = 0x20000, scoped, tag = 'input window, operand 1, single buffered']
    #allocation6 [shape = 's32[1]{0}', space=sflag, size = 0x4, scoped, tag = 'scoped memory for tpu_custom_call.1']
    #allocation7 [shape = 'u8[131072]{0}', space=vmem, size = 0x20000, scoped, tag = 'input window, operand 3, single buffered']
    #allocation8 [shape = 'u8[8192]{0}', space=vmem, size = 0x2000, scoped, tag = 'output window, operand 0, single buffered']
    %10 = vsyncpa [#allocation3], 0
    %11 = vsyncpa [#allocation6], 0
    %12 = vsyncpa [#allocation4], 0
    // Predicated region
    $region2: #{tpu_custom_call.1} parent=1 // pred_check
      _
    $region3: #{tpu_custom_call.1} parent=1 // pred_check_branch
      %14 = sbr.rel (0) target = $region5
    $region4: #{tpu_custom_call.1} parent=1 // pred_region
      %s16 = ssub.s32 256, 256
      %17 = vsyncadd [#allocation3], %s16
      %s18 = sshll.u32 [#allocation2], 4
      %s19 = int_to_ptr.vmem [resolvable:$true] %s18
      %24 = dma.hbm_to_vmem [thread:$0]  %s0, 256, %s19, [#allocation3], 128, 128, 8
    $region5: #{tpu_custom_call.1} parent=1 // pred_fallthru
      _
    // Predicated region
    $region6: #{tpu_custom_call.1} parent=1 // pred_check
      _
    $region7: #{tpu_custom_call.1} parent=1 // pred_check_branch
      %26 = sbr.rel (0) target = $region9
    $region8: #{tpu_custom_call.1} parent=1 // pred_region
      %s28 = ssub.s32 4096, 4096
      %29 = vsyncadd [#allocation6], %s28
      %s30 = sshll.u32 [#allocation5], 4
      %s31 = int_to_ptr.vmem [resolvable:$true] %s30
      %36 = dma.hbm_to_vmem [thread:$0]  %s1, 4096, %s31, [#allocation6], 256, 256, 16
    $region9: #{tpu_custom_call.1} parent=1 // pred_fallthru
      _
    // Predicated region
    $region10: #{tpu_custom_call.1} parent=1 // pred_check
      _
    $region11: #{tpu_custom_call.1} parent=1 // pred_check_branch
      %38 = sbr.rel (0) target = $region13
    $region12: #{tpu_custom_call.1} parent=1 // pred_region
      _
    $region13: #{tpu_custom_call.1} parent=1 // pred_fallthru
      _
    // Predicated region
    $region14: #{tpu_custom_call.1} parent=1 // pred_check
      _
    $region15: #{tpu_custom_call.1} parent=1 // pred_check_branch
      %40 = sbr.rel (0) target = $region17
    $region16: #{tpu_custom_call.1} parent=1 // pred_region
      %s42 = ssub.s32 4096, 4096
      %43 = vsyncadd [#allocation6], %s42
      %s44 = sshll.u32 [#allocation7], 4
      %s45 = int_to_ptr.vmem [resolvable:$true] %s44
      %50 = dma.hbm_to_vmem [thread:$0]  %s3, 4096, %s45, [#allocation6], 64, 64, 4
    $region17: #{tpu_custom_call.1} parent=1 // pred_fallthru
      _
    // Predicated region
    $region18: #{tpu_custom_call.1} parent=1 // pred_check
      _
    $region19: #{tpu_custom_call.1} parent=1 // pred_check_branch
      %52 = sbr.rel (0) target = $region21
    $region20: #{tpu_custom_call.1} parent=1 // pred_region
      _
    $region21: #{tpu_custom_call.1} parent=1 // pred_fallthru
      _
    // Predicated region
    $region22: #{tpu_custom_call.1} parent=1 // pred_check
      _
    $region23: #{tpu_custom_call.1} parent=1 // pred_check_branch
      %54 = sbr.rel (0) target = $region25
    $region24: #{tpu_custom_call.1} parent=1 // pred_region
      %55 = dma.done [#allocation3], 256
    $region25: #{tpu_custom_call.1} parent=1 // pred_fallthru
      _
    // Predicated region
    $region26: #{tpu_custom_call.1} parent=1 // pred_check
      _
    $region27: #{tpu_custom_call.1} parent=1 // pred_check_branch
      %57 = sbr.rel (0) target = $region29
    $region28: #{tpu_custom_call.1} parent=1 // pred_region
      %58 = dma.done [#allocation6], 4096
    $region29: #{tpu_custom_call.1} parent=1 // pred_fallthru
      _
    // Predicated region
    $region30: #{tpu_custom_call.1} parent=1 // pred_check
      _
    $region31: #{tpu_custom_call.1} parent=1 // pred_check_branch
      %60 = sbr.rel (0) target = $region33
    $region32: #{tpu_custom_call.1} parent=1 // pred_region
      %61 = dma.done [#allocation6], 4096
    $region33: #{tpu_custom_call.1} parent=1 // pred_fallthru
      _
    %v63 = vld [vmem:[#allocation2] sm:$0xff]
    %v64 = vld [vmem:[#allocation2 + $0x8] sm:$0xff]
    %v65 = vpack.c.bf16 %v64, %v63
    %v66 = vld [vmem:[#allocation5] sm:$0xff]
    %v67 = vld [vmem:[#allocation5 + $0x10] sm:$0xff]
    %v68 = vld [vmem:[#allocation5 + $0x20] sm:$0xff]
    %v69 = vld [vmem:[#allocation5 + $0x30] sm:$0xff]
    %v70 = vld [vmem:[#allocation5 + $0x40] sm:$0xff]
    %v71 = vld [vmem:[#allocation5 + $0x50] sm:$0xff]
    %v72 = vld [vmem:[#allocation5 + $0x60] sm:$0xff]
    %v73 = vld [vmem:[#allocation5 + $0x70] sm:$0xff]
    %v74 = vld [vmem:[#allocation5 + $0x80] sm:$0xff]
    %v75 = vld [vmem:[#allocation5 + $0x90] sm:$0xff]
    %v76 = vld [vmem:[#allocation5 + $0xa0] sm:$0xff]
    %v77 = vld [vmem:[#allocation5 + $0xb0] sm:$0xff]
    %v78 = vld [vmem:[#allocation5 + $0xc0] sm:$0xff]
    %v79 = vld [vmem:[#allocation5 + $0xd0] sm:$0xff]
    %v80 = vld [vmem:[#allocation5 + $0xe0] sm:$0xff]
    %v81 = vld [vmem:[#allocation5 + $0xf0] sm:$0xff]
    %v82 = vld [vmem:[%s2] sm:$0x3]
    %v84 = vlaneseq
    %v85 = vshrl.u32 %v84, 7
    %v86 = vsub.s32 0, %v85
    %v87 = vrot.slane %v82, %v86
    %v88 = vlaneseq
    %v89 = vshrl.u32 %v88, 7
    %v90 = vsub.s32 1, %v89
    %v91 = vrot.slane %v82, %v90
    %v110 = vunpack.c.l.b16 %v66
    %v111 = vunpack.c.h.b16 %v66
    %v112 = vunpack.c.l.b16 %v67
    %v113 = vunpack.c.h.b16 %v67
    %v114 = vunpack.c.l.b16 %v68
    %v115 = vunpack.c.h.b16 %v68
    %v116 = vunpack.c.l.b16 %v69
    %v117 = vunpack.c.h.b16 %v69
    %v118 = vunpack.c.l.b16 %v70
    %v119 = vunpack.c.h.b16 %v70
    %v120 = vunpack.c.l.b16 %v71
    %v121 = vunpack.c.h.b16 %v71
    %v122 = vunpack.c.l.b16 %v72
    %v123 = vunpack.c.h.b16 %v72
    %v124 = vunpack.c.l.b16 %v73
    %v125 = vunpack.c.h.b16 %v73
    %v126 = vunpack.c.l.b16 %v74
    %v127 = vunpack.c.h.b16 %v74
    %v128 = vunpack.c.l.b16 %v75
    %v129 = vunpack.c.h.b16 %v75
    %v130 = vunpack.c.l.b16 %v76
    %v131 = vunpack.c.h.b16 %v76
    %v132 = vunpack.c.l.b16 %v77
    %v133 = vunpack.c.h.b16 %v77
    %v134 = vunpack.c.l.b16 %v78
    %v135 = vunpack.c.h.b16 %v78
    %v136 = vunpack.c.l.b16 %v79
    %v137 = vunpack.c.h.b16 %v79
    %v138 = vunpack.c.l.b16 %v80
    %v139 = vunpack.c.h.b16 %v80
    %v140 = vunpack.c.l.b16 %v81
    %v141 = vunpack.c.h.b16 %v81
    %v142 = vpack.c.b16 %v112, %v110
    %v143 = vpack.c.b16 %v113, %v111
    %v144 = vpack.c.b16 %v116, %v114
    %v145 = vpack.c.b16 %v117, %v115
    %v146 = vpack.c.b16 %v120, %v118
    %v147 = vpack.c.b16 %v121, %v119
    %v148 = vpack.c.b16 %v124, %v122
    %v149 = vpack.c.b16 %v125, %v123
    %v150 = vpack.c.b16 %v128, %v126
    %v151 = vpack.c.b16 %v129, %v127
    %v152 = vpack.c.b16 %v132, %v130
    %v153 = vpack.c.b16 %v133, %v131
    %v154 = vpack.c.b16 %v136, %v134
    %v155 = vpack.c.b16 %v137, %v135
    %v156 = vpack.c.b16 %v140, %v138
    %v157 = vpack.c.b16 %v141, %v139
    %174 = vmatprep.subr.bf16.mxu0 %v143
    %175 = vmatpush1.bf16.msra.mxu0 %v142
    %176 = vmatprep.subr.bf16.mxu0 %v145
    %177 = vmatpush1.bf16.msra.mxu0 %v144
    %178 = vmatprep.subr.bf16.mxu0 %v147
    %179 = vmatpush1.bf16.msra.mxu0 %v146
    %180 = vmatprep.subr.bf16.mxu0 %v149
    %181 = vmatpush1.bf16.msra.mxu0 %v148
    %182 = vmatprep.subr.bf16.mxu0 %v151
    %183 = vmatpush1.bf16.msra.mxu0 %v150
    %184 = vmatprep.subr.bf16.mxu0 %v153
    %185 = vmatpush1.bf16.msra.mxu0 %v152
    %186 = vmatprep.subr.bf16.mxu0 %v155
    %187 = vmatpush1.bf16.msra.mxu0 %v154
    %188 = vmatprep.subr.bf16.mxu0 %v157
    %189 = vmatpush1.bf16.msra.mxu0 %v156
    %190 = vmatprep.subr.bf16.mxu0 0
    %191 = vmatpush1.bf16.msra.mxu0 0
    %192 = vmatprep.subr.bf16.mxu0 0
    %193 = vmatpush1.bf16.msra.mxu0 0
    %194 = vmatprep.subr.bf16.mxu0 0
    %195 = vmatpush1.bf16.msra.mxu0 0
    %196 = vmatprep.subr.bf16.mxu0 0
    %197 = vmatpush1.bf16.msra.mxu0 0
    %198 = vmatprep.subr.bf16.mxu0 0
    %199 = vmatpush1.bf16.msra.mxu0 0
    %200 = vmatprep.subr.bf16.mxu0 0
    %201 = vmatpush1.bf16.msra.mxu0 0
    %202 = vmatprep.subr.bf16.mxu0 0
    %203 = vmatpush1.bf16.msra.mxu0 0
    %204 = vmatprep.subr.bf16.mxu0 0
    %205 = vmatpush1.bf16.msra.mxu0 0
    %206 = vmatprep.mubr.bf16.mxu0 0
    %207 = vmatmul.mubr.bf16.gmra.mrb[0].mxu0 %v65
    %v208 = vpop.f32.mrb[0].mxu0
    %v209 = vadd.f32 %v87, %v208
    %v210 = vpop.f32.mrb[0].mxu0
    %v211 = vadd.f32 %v91, %v210
    %v212 = vpop.f32.mrb[0].mxu0
    %v213 = vadd.f32 %v87, %v212
    %v214 = vpop.f32.mrb[0].mxu0
    %v215 = vadd.f32 %v91, %v214
    %216 = vdwg.mxu0
    %v217 = vmul.f32 %v209, 0.5
    %v218 = vmul.f32 %v211, 0.5
    %v219 = vmul.f32 %v213, 0.5
    %v220 = vmul.f32 %v215, 0.5
    %v221 = vmul.f32 %v209, %v209
    %v222 = vmul.f32 %v211, %v211
    %v223 = vmul.f32 %v213, %v213
    %v224 = vmul.f32 %v215, %v215
    %v225 = vmul.f32 %v221, %v209
    %v226 = vmul.f32 %v222, %v211
    %v227 = vmul.f32 %v223, %v213
    %v228 = vmul.f32 %v224, %v215
    %v229 = vmul.f32 %v225, 0.044715
    %v230 = vmul.f32 %v226, 0.044715
    %v231 = vmul.f32 %v227, 0.044715
    %v232 = vmul.f32 %v228, 0.044715
    %v233 = vadd.f32 %v209, %v229
    %v234 = vadd.f32 %v211, %v230
    %v235 = vadd.f32 %v213, %v231
    %v236 = vadd.f32 %v215, %v232
    %v237 = vmul.f32 %v233, 0.7978846
    %v238 = vmul.f32 %v234, 0.7978846
    %v239 = vmul.f32 %v235, 0.7978846
    %v240 = vmul.f32 %v236, 0.7978846
    %v241 = vtanh.pop %v237
    %v242 = vtanh.pop %v238
    %v243 = vtanh.pop %v239
    %v244 = vtanh.pop %v240
    %v245 = vadd.f32 %v241, 1.0
    %v246 = vadd.f32 %v242, 1.0
    %v247 = vadd.f32 %v243, 1.0
    %v248 = vadd.f32 %v244, 1.0
    %v249 = vmul.f32 %v217, %v245
    %v250 = vmul.f32 %v218, %v246
    %v251 = vmul.f32 %v219, %v247
    %v252 = vmul.f32 %v220, %v248
    %v253 = vpack.c.bf16 %v251, %v249
    %v254 = vpack.c.bf16 %v252, %v250
    %v255 = vld [vmem:[#allocation7] sm:$0xf]
    %v256 = vld [vmem:[#allocation7 + $0x4] sm:$0xf]
    %v257 = vld [vmem:[#allocation7 + $0x8] sm:$0xf]
    %v258 = vld [vmem:[#allocation7 + $0xc] sm:$0xf]
    %v259 = vld [vmem:[#allocation7 + $0x10] sm:$0xf]
    %v260 = vld [vmem:[#allocation7 + $0x14] sm:$0xf]
    %v261 = vld [vmem:[#allocation7 + $0x18] sm:$0xf]
    %v262 = vld [vmem:[#allocation7 + $0x1c] sm:$0xf]
    %v263 = vld [vmem:[#allocation7 + $0x20] sm:$0xf]
    %v264 = vld [vmem:[#allocation7 + $0x24] sm:$0xf]
    %v265 = vld [vmem:[#allocation7 + $0x28] sm:$0xf]
    %v266 = vld [vmem:[#allocation7 + $0x2c] sm:$0xf]
    %v267 = vld [vmem:[#allocation7 + $0x30] sm:$0xf]
    %v268 = vld [vmem:[#allocation7 + $0x34] sm:$0xf]
    %v269 = vld [vmem:[#allocation7 + $0x38] sm:$0xf]
    %v270 = vld [vmem:[#allocation7 + $0x3c] sm:$0xf]
    %v271 = vld [vmem:[#allocation7 + $0x40] sm:$0xf]
    %v272 = vld [vmem:[#allocation7 + $0x44] sm:$0xf]
    %v273 = vld [vmem:[#allocation7 + $0x48] sm:$0xf]
    %v274 = vld [vmem:[#allocation7 + $0x4c] sm:$0xf]
    %v275 = vld [vmem:[#allocation7 + $0x50] sm:$0xf]
    %v276 = vld [vmem:[#allocation7 + $0x54] sm:$0xf]
    %v277 = vld [vmem:[#allocation7 + $0x58] sm:$0xf]
    %v278 = vld [vmem:[#allocation7 + $0x5c] sm:$0xf]
    %v279 = vld [vmem:[#allocation7 + $0x60] sm:$0xf]
    %v280 = vld [vmem:[#allocation7 + $0x64] sm:$0xf]
    %v281 = vld [vmem:[#allocation7 + $0x68] sm:$0xf]
    %v282 = vld [vmem:[#allocation7 + $0x6c] sm:$0xf]
    %v283 = vld [vmem:[#allocation7 + $0x70] sm:$0xf]
    %v284 = vld [vmem:[#allocation7 + $0x74] sm:$0xf]
    %v285 = vld [vmem:[#allocation7 + $0x78] sm:$0xf]
    %v286 = vld [vmem:[#allocation7 + $0x7c] sm:$0xf]
    %v287 = vld [vmem:[#allocation5 + $0x8] sm:$0xff]
    %v288 = vld [vmem:[#allocation5 + $0x18] sm:$0xff]
    %v289 = vld [vmem:[#allocation5 + $0x28] sm:$0xff]
    %v290 = vld [vmem:[#allocation5 + $0x38] sm:$0xff]
    %v291 = vld [vmem:[#allocation5 + $0x48] sm:$0xff]
    %v292 = vld [vmem:[#allocation5 + $0x58] sm:$0xff]
    %v293 = vld [vmem:[#allocation5 + $0x68] sm:$0xff]
    %v294 = vld [vmem:[#allocation5 + $0x78] sm:$0xff]
    %v295 = vld [vmem:[#allocation5 + $0x88] sm:$0xff]
    %v296 = vld [vmem:[#allocation5 + $0x98] sm:$0xff]
    %v297 = vld [vmem:[#allocation5 + $0xa8] sm:$0xff]
    %v298 = vld [vmem:[#allocation5 + $0xb8] sm:$0xff]
    %v299 = vld [vmem:[#allocation5 + $0xc8] sm:$0xff]
    %v300 = vld [vmem:[#allocation5 + $0xd8] sm:$0xff]
    %v301 = vld [vmem:[#allocation5 + $0xe8] sm:$0xff]
    %v302 = vld [vmem:[#allocation5 + $0xf8] sm:$0xff]
    %v303 = vld [vmem:[%s2 + $0x2] sm:$0x3]
    %v305 = vlaneseq
    %v306 = vshrl.u32 %v305, 7
    %v307 = vsub.s32 0, %v306
    %v308 = vrot.slane %v303, %v307
    %v309 = vlaneseq
    %v310 = vshrl.u32 %v309, 7
    %v311 = vsub.s32 1, %v310
    %v312 = vrot.slane %v303, %v311
    %v331 = vunpack.c.l.b16 %v287
    %v332 = vunpack.c.h.b16 %v287
    %v333 = vunpack.c.l.b16 %v288
    %v334 = vunpack.c.h.b16 %v288
    %v335 = vunpack.c.l.b16 %v289
    %v336 = vunpack.c.h.b16 %v289
    %v337 = vunpack.c.l.b16 %v290
    %v338 = vunpack.c.h.b16 %v290
    %v339 = vunpack.c.l.b16 %v291
    %v340 = vunpack.c.h.b16 %v291
    %v341 = vunpack.c.l.b16 %v292
    %v342 = vunpack.c.h.b16 %v292
    %v343 = vunpack.c.l.b16 %v293
    %v344 = vunpack.c.h.b16 %v293
    %v345 = vunpack.c.l.b16 %v294
    %v346 = vunpack.c.h.b16 %v294
    %v347 = vunpack.c.l.b16 %v295
    %v348 = vunpack.c.h.b16 %v295
    %v349 = vunpack.c.l.b16 %v296
    %v350 = vunpack.c.h.b16 %v296
    %v351 = vunpack.c.l.b16 %v297
    %v352 = vunpack.c.h.b16 %v297
    %v353 = vunpack.c.l.b16 %v298
    %v354 = vunpack.c.h.b16 %v298
    %v355 = vunpack.c.l.b16 %v299
    %v356 = vunpack.c.h.b16 %v299
    %v357 = vunpack.c.l.b16 %v300
    %v358 = vunpack.c.h.b16 %v300
    %v359 = vunpack.c.l.b16 %v301
    %v360 = vunpack.c.h.b16 %v301
    %v361 = vunpack.c.l.b16 %v302
    %v362 = vunpack.c.h.b16 %v302
    %v363 = vpack.c.b16 %v333, %v331
    %v364 = vpack.c.b16 %v334, %v332
    %v365 = vpack.c.b16 %v337, %v335
    %v366 = vpack.c.b16 %v338, %v336
    %v367 = vpack.c.b16 %v341, %v339
    %v368 = vpack.c.b16 %v342, %v340
    %v369 = vpack.c.b16 %v345, %v343
    %v370 = vpack.c.b16 %v346, %v344
    %v371 = vpack.c.b16 %v349, %v347
    %v372 = vpack.c.b16 %v350, %v348
    %v373 = vpack.c.b16 %v353, %v351
    %v374 = vpack.c.b16 %v354, %v352
    %v375 = vpack.c.b16 %v357, %v355
    %v376 = vpack.c.b16 %v358, %v356
    %v377 = vpack.c.b16 %v361, %v359
    %v378 = vpack.c.b16 %v362, %v360
    %395 = vmatprep.subr.bf16.mxu0 %v364
    %396 = vmatpush1.bf16.msra.mxu0 %v363
    %397 = vmatprep.subr.bf16.mxu0 %v366
    %398 = vmatpush1.bf16.msra.mxu0 %v365
    %399 = vmatprep.subr.bf16.mxu0 %v368
    %400 = vmatpush1.bf16.msra.mxu0 %v367
    %401 = vmatprep.subr.bf16.mxu0 %v370
    %402 = vmatpush1.bf16.msra.mxu0 %v369
    %403 = vmatprep.subr.bf16.mxu0 %v372
    %404 = vmatpush1.bf16.msra.mxu0 %v371
    %405 = vmatprep.subr.bf16.mxu0 %v374
    %406 = vmatpush1.bf16.msra.mxu0 %v373
    %407 = vmatprep.subr.bf16.mxu0 %v376
    %408 = vmatpush1.bf16.msra.mxu0 %v375
    %409 = vmatprep.subr.bf16.mxu0 %v378
    %410 = vmatpush1.bf16.msra.mxu0 %v377
    %411 = vmatprep.subr.bf16.mxu0 0
    %412 = vmatpush1.bf16.msra.mxu0 0
    %413 = vmatprep.subr.bf16.mxu0 0
    %414 = vmatpush1.bf16.msra.mxu0 0
    %415 = vmatprep.subr.bf16.mxu0 0
    %416 = vmatpush1.bf16.msra.mxu0 0
    %417 = vmatprep.subr.bf16.mxu0 0
    %418 = vmatpush1.bf16.msra.mxu0 0
    %419 = vmatprep.subr.bf16.mxu0 0
    %420 = vmatpush1.bf16.msra.mxu0 0
    %421 = vmatprep.subr.bf16.mxu0 0
    %422 = vmatpush1.bf16.msra.mxu0 0
    %423 = vmatprep.subr.bf16.mxu0 0
    %424 = vmatpush1.bf16.msra.mxu0 0
    %425 = vmatprep.subr.bf16.mxu0 0
    %426 = vmatpush1.bf16.msra.mxu0 0
    %427 = vmatprep.mubr.bf16.mxu0 0
    %428 = vmatmul.mubr.bf16.gmra.mrb[0].mxu0 %v65
    %v429 = vpop.f32.mrb[0].mxu0
    %v430 = vadd.f32 %v308, %v429
    %v431 = vpop.f32.mrb[0].mxu0
    %v432 = vadd.f32 %v312, %v431
    %v433 = vpop.f32.mrb[0].mxu0
    %v434 = vadd.f32 %v308, %v433
    %v435 = vpop.f32.mrb[0].mxu0
    %v436 = vadd.f32 %v312, %v435
    %437 = vdwg.mxu0
    %v438 = vmul.f32 %v430, 0.5
    %v439 = vmul.f32 %v432, 0.5
    %v440 = vmul.f32 %v434, 0.5
    %v441 = vmul.f32 %v436, 0.5
    %v442 = vmul.f32 %v430, %v430
    %v443 = vmul.f32 %v432, %v432
    %v444 = vmul.f32 %v434, %v434
    %v445 = vmul.f32 %v436, %v436
    %v446 = vmul.f32 %v442, %v430
    %v447 = vmul.f32 %v443, %v432
    %v448 = vmul.f32 %v444, %v434
    %v449 = vmul.f32 %v445, %v436
    %v450 = vmul.f32 %v446, 0.044715
    %v451 = vmul.f32 %v447, 0.044715
    %v452 = vmul.f32 %v448, 0.044715
    %v453 = vmul.f32 %v449, 0.044715
    %v454 = vadd.f32 %v430, %v450
    %v455 = vadd.f32 %v432, %v451
    %v456 = vadd.f32 %v434, %v452
    %v457 = vadd.f32 %v436, %v453
    %v458 = vmul.f32 %v454, 0.7978846
    %v459 = vmul.f32 %v455, 0.7978846
    %v460 = vmul.f32 %v456, 0.7978846
    %v461 = vmul.f32 %v457, 0.7978846
    %v462 = vtanh.pop %v458
    %v463 = vtanh.pop %v459
    %v464 = vtanh.pop %v460
    %v465 = vtanh.pop %v461
    %v466 = vadd.f32 %v462, 1.0
    %v467 = vadd.f32 %v463, 1.0
    %v468 = vadd.f32 %v464, 1.0
    %v469 = vadd.f32 %v465, 1.0
    %v470 = vmul.f32 %v438, %v466
    %v471 = vmul.f32 %v439, %v467
    %v472 = vmul.f32 %v440, %v468
    %v473 = vmul.f32 %v441, %v469
    %v474 = vpack.c.bf16 %v472, %v470
    %v475 = vpack.c.bf16 %v473, %v471
    %v476 = vld [vmem:[#allocation7 + $0x80] sm:$0xf]
    %v477 = vld [vmem:[#allocation7 + $0x84] sm:$0xf]
    %v478 = vld [vmem:[#allocation7 + $0x88] sm:$0xf]
    %v479 = vld [vmem:[#allocation7 + $0x8c] sm:$0xf]
    %v480 = vld [vmem:[#allocation7 + $0x90] sm:$0xf]
    %v481 = vld [vmem:[#allocation7 + $0x94] sm:$0xf]
    %v482 = vld [vmem:[#allocation7 + $0x98] sm:$0xf]
    %v483 = vld [vmem:[#allocation7 + $0x9c] sm:$0xf]
    %v484 = vld [vmem:[#allocation7 + $0xa0] sm:$0xf]
    %v485 = vld [vmem:[#allocation7 + $0xa4] sm:$0xf]
    %v486 = vld [vmem:[#allocation7 + $0xa8] sm:$0xf]
    %v487 = vld [vmem:[#allocation7 + $0xac] sm:$0xf]
    %v488 = vld [vmem:[#allocation7 + $0xb0] sm:$0xf]
    %v489 = vld [vmem:[#allocation7 + $0xb4] sm:$0xf]
    %v490 = vld [vmem:[#allocation7 + $0xb8] sm:$0xf]
    %v491 = vld [vmem:[#allocation7 + $0xbc] sm:$0xf]
    %v492 = vld [vmem:[#allocation7 + $0xc0] sm:$0xf]
    %v493 = vld [vmem:[#allocation7 + $0xc4] sm:$0xf]
    %v494 = vld [vmem:[#allocation7 + $0xc8] sm:$0xf]
    %v495 = vld [vmem:[#allocation7 + $0xcc] sm:$0xf]
    %v496 = vld [vmem:[#allocation7 + $0xd0] sm:$0xf]
    %v497 = vld [vmem:[#allocation7 + $0xd4] sm:$0xf]
    %v498 = vld [vmem:[#allocation7 + $0xd8] sm:$0xf]
    %v499 = vld [vmem:[#allocation7 + $0xdc] sm:$0xf]
    %v500 = vld [vmem:[#allocation7 + $0xe0] sm:$0xf]
    %v501 = vld [vmem:[#allocation7 + $0xe4] sm:$0xf]
    %v502 = vld [vmem:[#allocation7 + $0xe8] sm:$0xf]
    %v503 = vld [vmem:[#allocation7 + $0xec] sm:$0xf]
    %v504 = vld [vmem:[#allocation7 + $0xf0] sm:$0xf]
    %v505 = vld [vmem:[#allocation7 + $0xf4] sm:$0xf]
    %v506 = vld [vmem:[#allocation7 + $0xf8] sm:$0xf]
    %v507 = vld [vmem:[#allocation7 + $0xfc] sm:$0xf]
    %v540 = vunpack.c.l.b16 %v476
    %v541 = vunpack.c.l.b16 %v477
    %v542 = vunpack.c.l.b16 %v478
    %v543 = vunpack.c.l.b16 %v479
    %v544 = vunpack.c.l.b16 %v480
    %v545 = vunpack.c.l.b16 %v481
    %v546 = vunpack.c.l.b16 %v482
    %v547 = vunpack.c.l.b16 %v483
    %v548 = vunpack.c.l.b16 %v484
    %v549 = vunpack.c.l.b16 %v485
    %v550 = vunpack.c.l.b16 %v486
    %v551 = vunpack.c.l.b16 %v487
    %v552 = vunpack.c.l.b16 %v488
    %v553 = vunpack.c.l.b16 %v489
    %v554 = vunpack.c.l.b16 %v490
    %v555 = vunpack.c.l.b16 %v491
    %v556 = vunpack.c.l.b16 %v492
    %v557 = vunpack.c.l.b16 %v493
    %v558 = vunpack.c.l.b16 %v494
    %v559 = vunpack.c.l.b16 %v495
    %v560 = vunpack.c.l.b16 %v496
    %v561 = vunpack.c.l.b16 %v497
    %v562 = vunpack.c.l.b16 %v498
    %v563 = vunpack.c.l.b16 %v499
    %v564 = vunpack.c.l.b16 %v500
    %v565 = vunpack.c.l.b16 %v501
    %v566 = vunpack.c.l.b16 %v502
    %v567 = vunpack.c.l.b16 %v503
    %v568 = vunpack.c.l.b16 %v504
    %v569 = vunpack.c.l.b16 %v505
    %v570 = vunpack.c.l.b16 %v506
    %v571 = vunpack.c.l.b16 %v507
    %v572 = vpack.c.b16 %v541, %v540
    %v573 = vpack.c.b16 %v543, %v542
    %v574 = vpack.c.b16 %v545, %v544
    %v575 = vpack.c.b16 %v547, %v546
    %v576 = vpack.c.b16 %v549, %v548
    %v577 = vpack.c.b16 %v551, %v550
    %v578 = vpack.c.b16 %v553, %v552
    %v579 = vpack.c.b16 %v555, %v554
    %v580 = vpack.c.b16 %v557, %v556
    %v581 = vpack.c.b16 %v559, %v558
    %v582 = vpack.c.b16 %v561, %v560
    %v583 = vpack.c.b16 %v563, %v562
    %v584 = vpack.c.b16 %v565, %v564
    %v585 = vpack.c.b16 %v567, %v566
    %v586 = vpack.c.b16 %v569, %v568
    %v587 = vpack.c.b16 %v571, %v570
    %604 = vmatprep.subr.bf16.mxu0 0
    %605 = vmatpush1.bf16.msra.mxu0 %v572
    %606 = vmatprep.subr.bf16.mxu0 0
    %607 = vmatpush1.bf16.msra.mxu0 %v573
    %608 = vmatprep.subr.bf16.mxu0 0
    %609 = vmatpush1.bf16.msra.mxu0 %v574
    %610 = vmatprep.subr.bf16.mxu0 0
    %611 = vmatpush1.bf16.msra.mxu0 %v575
    %612 = vmatprep.subr.bf16.mxu0 0
    %613 = vmatpush1.bf16.msra.mxu0 %v576
    %614 = vmatprep.subr.bf16.mxu0 0
    %615 = vmatpush1.bf16.msra.mxu0 %v577
    %616 = vmatprep.subr.bf16.mxu0 0
    %617 = vmatpush1.bf16.msra.mxu0 %v578
    %618 = vmatprep.subr.bf16.mxu0 0
    %619 = vmatpush1.bf16.msra.mxu0 %v579
    %620 = vmatprep.subr.bf16.mxu0 0
    %621 = vmatpush1.bf16.msra.mxu0 %v580
    %622 = vmatprep.subr.bf16.mxu0 0
    %623 = vmatpush1.bf16.msra.mxu0 %v581
    %624 = vmatprep.subr.bf16.mxu0 0
    %625 = vmatpush1.bf16.msra.mxu0 %v582
    %626 = vmatprep.subr.bf16.mxu0 0
    %627 = vmatpush1.bf16.msra.mxu0 %v583
    %628 = vmatprep.subr.bf16.mxu0 0
    %629 = vmatpush1.bf16.msra.mxu0 %v584
    %630 = vmatprep.subr.bf16.mxu0 0
    %631 = vmatpush1.bf16.msra.mxu0 %v585
    %632 = vmatprep.subr.bf16.mxu0 0
    %633 = vmatpush1.bf16.msra.mxu0 %v586
    %634 = vmatprep.subr.bf16.mxu0 0
    %635 = vmatpush1.bf16.msra.mxu0 %v587
    %636 = vmatprep.mubr.bf16.mxu0 %v475
    %637 = vmatmul.mubr.bf16.gmra.mrb[0].mxu0 %v474
    %v638 = vpop.f32.mrb[0].mxu0
    %v639 = vadd.f32 0.0, %v638
    %v640 = vpop.f32.mrb[0].mxu0
    %v641 = vpop.f32.mrb[0].mxu0
    %v642 = vadd.f32 0.0, %v641
    %v643 = vpop.f32.mrb[0].mxu0
    %644 = vdwg.mxu0
    %v677 = vunpack.c.l.b16 %v255
    %v678 = vunpack.c.l.b16 %v256
    %v679 = vunpack.c.l.b16 %v257
    %v680 = vunpack.c.l.b16 %v258
    %v681 = vunpack.c.l.b16 %v259
    %v682 = vunpack.c.l.b16 %v260
    %v683 = vunpack.c.l.b16 %v261
    %v684 = vunpack.c.l.b16 %v262
    %v685 = vunpack.c.l.b16 %v263
    %v686 = vunpack.c.l.b16 %v264
    %v687 = vunpack.c.l.b16 %v265
    %v688 = vunpack.c.l.b16 %v266
    %v689 = vunpack.c.l.b16 %v267
    %v690 = vunpack.c.l.b16 %v268
    %v691 = vunpack.c.l.b16 %v269
    %v692 = vunpack.c.l.b16 %v270
    %v693 = vunpack.c.l.b16 %v271
    %v694 = vunpack.c.l.b16 %v272
    %v695 = vunpack.c.l.b16 %v273
    %v696 = vunpack.c.l.b16 %v274
    %v697 = vunpack.c.l.b16 %v275
    %v698 = vunpack.c.l.b16 %v276
    %v699 = vunpack.c.l.b16 %v277
    %v700 = vunpack.c.l.b16 %v278
    %v701 = vunpack.c.l.b16 %v279
    %v702 = vunpack.c.l.b16 %v280
    %v703 = vunpack.c.l.b16 %v281
    %v704 = vunpack.c.l.b16 %v282
    %v705 = vunpack.c.l.b16 %v283
    %v706 = vunpack.c.l.b16 %v284
    %v707 = vunpack.c.l.b16 %v285
    %v708 = vunpack.c.l.b16 %v286
    %v709 = vpack.c.b16 %v678, %v677
    %v710 = vpack.c.b16 %v680, %v679
    %v711 = vpack.c.b16 %v682, %v681
    %v712 = vpack.c.b16 %v684, %v683
    %v713 = vpack.c.b16 %v686, %v685
    %v714 = vpack.c.b16 %v688, %v687
    %v715 = vpack.c.b16 %v690, %v689
    %v716 = vpack.c.b16 %v692, %v691
    %v717 = vpack.c.b16 %v694, %v693
    %v718 = vpack.c.b16 %v696, %v695
    %v719 = vpack.c.b16 %v698, %v697
    %v720 = vpack.c.b16 %v700, %v699
    %v721 = vpack.c.b16 %v702, %v701
    %v722 = vpack.c.b16 %v704, %v703
    %v723 = vpack.c.b16 %v706, %v705
    %v724 = vpack.c.b16 %v708, %v707
    %741 = vmatprep.subr.bf16.mxu0 0
    %742 = vmatpush1.bf16.msra.mxu0 %v709
    %743 = vmatprep.subr.bf16.mxu0 0
    %744 = vmatpush1.bf16.msra.mxu0 %v710
    %745 = vmatprep.subr.bf16.mxu0 0
    %746 = vmatpush1.bf16.msra.mxu0 %v711
    %747 = vmatprep.subr.bf16.mxu0 0
    %748 = vmatpush1.bf16.msra.mxu0 %v712
    %749 = vmatprep.subr.bf16.mxu0 0
    %750 = vmatpush1.bf16.msra.mxu0 %v713
    %751 = vmatprep.subr.bf16.mxu0 0
    %752 = vmatpush1.bf16.msra.mxu0 %v714
    %753 = vmatprep.subr.bf16.mxu0 0
    %754 = vmatpush1.bf16.msra.mxu0 %v715
    %755 = vmatprep.subr.bf16.mxu0 0
    %756 = vmatpush1.bf16.msra.mxu0 %v716
    %757 = vmatprep.subr.bf16.mxu0 0
    %758 = vmatpush1.bf16.msra.mxu0 %v717
    %759 = vmatprep.subr.bf16.mxu0 0
    %760 = vmatpush1.bf16.msra.mxu0 %v718
    %761 = vmatprep.subr.bf16.mxu0 0
    %762 = vmatpush1.bf16.msra.mxu0 %v719
    %763 = vmatprep.subr.bf16.mxu0 0
    %764 = vmatpush1.bf16.msra.mxu0 %v720
    %765 = vmatprep.subr.bf16.mxu0 0
    %766 = vmatpush1.bf16.msra.mxu0 %v721
    %767 = vmatprep.subr.bf16.mxu0 0
    %768 = vmatpush1.bf16.msra.mxu0 %v722
    %769 = vmatprep.subr.bf16.mxu0 0
    %770 = vmatpush1.bf16.msra.mxu0 %v723
    %771 = vmatprep.subr.bf16.mxu0 0
    %772 = vmatpush1.bf16.msra.mxu0 %v724
    %773 = vmatprep.mubr.bf16.mxu0 %v254
    %774 = vmatmul.mubr.bf16.gmra.mrb[0].mxu0 %v253
    %v775 = vpop.f32.mrb[0].mxu0
    %v776 = vadd.f32 %v639, %v775
    %v777 = vpop.f32.mrb[0].mxu0
    %v778 = vpop.f32.mrb[0].mxu0
    %v779 = vadd.f32 %v642, %v778
    %v780 = vpop.f32.mrb[0].mxu0
    %781 = vdwg.mxu0
    %v782 = vld [vmem:[%s4] sm:$0x1]
    %v784 = vlaneseq
    %v785 = vshrl.u32 %v784, 7
    %v786 = vsub.s32 0, %v785
    %v787 = vrot.slane %v782, %v786
    %v789 = vadd.f32 %v776, %v787
    %v790 = vadd.f32 %v779, %v787
    %791 = vst [vmem:[#allocation8] sm:$0xff] %v789
    %792 = vst [vmem:[#allocation8 + $0x8] sm:$0xff] %v790
    // Predicated region
    $region34: #{tpu_custom_call.1} parent=1 // pred_check
      _
    $region35: #{tpu_custom_call.1} parent=1 // pred_check_branch
      %794 = sbr.rel (0) target = $region37
    $region36: #{tpu_custom_call.1} parent=1 // pred_region
      %s796 = ssub.s32 256, 256
      %797 = vsyncadd [#allocation4], %s796
      %s798 = sshll.u32 [#allocation8], 4
      %s799 = int_to_ptr.vmem [resolvable:$true] %s798
      %804 = dma.vmem_to_hbm [thread:$0]  %s799, 256, %s5, [#allocation4], 128, 128, 8
    $region37: #{tpu_custom_call.1} parent=1 // pred_fallthru
      _
    // Predicated region
    $region38: #{tpu_custom_call.1} parent=1 // pred_check
      _
    $region39: #{tpu_custom_call.1} parent=1 // pred_check_branch
      %806 = sbr.rel (0) target = $region41
    $region40: #{tpu_custom_call.1} parent=1 // pred_region
      %807 = dma.done [#allocation4], 256
    $region41: #{tpu_custom_call.1} parent=1 // pred_fallthru
      _
    %808 = vsyncpa [#allocation3], 1
    %809 = vsyncpa [#allocation6], 1
    %810 = vsyncpa [#allocation4], 1

</llo_original>
